<compile_context>
chip_gen: v5e
topology: v5e:2x2
jax: 0.10.0
libtpu: 0.0.40
codegen_flags: <defaults>
</compile_context>

<pallas_src>
import jax
import jax.numpy as jnp
import numpy as np
from jax.experimental import pallas as pl
from jax.experimental.pallas import tpu as pltpu


def _make_concat4_dma_kernel(flat_sizes):
    """Kernel that DMAs each flattened input straight into its output slice."""
    offsets = np.cumsum([0] + list(flat_sizes))

    def kernel(c0_hbm, c1_hbm, c2_hbm, c3_hbm, o_hbm, sems):
        in_refs = (c0_hbm, c1_hbm, c2_hbm, c3_hbm)
        copies = []
        # Issue all four HBM->HBM DMAs back-to-back so they run concurrently
        # on the DMA engines; destination slices are disjoint so there is no
        # write conflict.
        for k, (ref, start, end) in enumerate(zip(in_refs, offsets[:-1], offsets[1:])):
            cp = pltpu.make_async_copy(
                ref,
                o_hbm.at[:, int(start):int(end)],
                sems.at[k],
            )
            cp.start()
            copies.append(cp)
        # Wait for completion of all four copies before the kernel returns.
        for cp in copies:
            cp.wait()

    return kernel


def concat4(c0, c1, c2, c3):
    """Pallas equivalent of torch.cat([c0, c1, c2, c3], dim=1) for NCHW tensors."""
    inputs = (c0, c1, c2, c3)
    N, _, H, W = c0.shape
    for x in inputs:
        assert x.ndim == 4 and x.shape[0] == N and x.shape[2] == H and x.shape[3] == W
        assert x.dtype == c0.dtype

    HW = H * W
    channel_sizes = [int(x.shape[1]) for x in inputs]
    flat_sizes = [c * HW for c in channel_sizes]
    c_total = sum(channel_sizes)
    total_flat = c_total * HW

    # Lane-flattened view (N, C*H*W): contiguous reshape -> no data movement.
    # Each input's DMA becomes a 2-D strided HBM->HBM copy (N rows of
    # flat_sizes[k] contiguous elements, destination row pitch total_flat).
    flats = [x.reshape(N, fs) for x, fs in zip(inputs, flat_sizes)]

    itemsize = jnp.dtype(c0.dtype).itemsize
    total_bytes = 2 * N * total_flat * itemsize  # read everything + write everything

    kernel = _make_concat4_dma_kernel(flat_sizes)

    out_flat = pl.pallas_call(
        kernel,
        out_shape=jax.ShapeDtypeStruct((N, total_flat), c0.dtype),
        # No grid: the whole concat is a handful of DMA descriptors issued once.
        in_specs=[pl.BlockSpec(memory_space=pl.ANY) for _ in inputs],
        out_specs=pl.BlockSpec(memory_space=pl.ANY),
        scratch_shapes=[pltpu.SemaphoreType.DMA((len(inputs),))],
        cost_estimate=pl.CostEstimate(
            flops=0, transcendentals=0, bytes_accessed=total_bytes
        ),
    )(*flats)

    return out_flat.reshape(N, c_total, H, W)


if __name__ == "__main__":
    key = jax.random.PRNGKey(0)
    k0, k1, k2, k3 = jax.random.split(key, 4)

    # Small NCHW inputs; channel counts intentionally differ to exercise concat.
    c0 = jax.random.normal(k0, (2, 4, 16, 16), dtype=jnp.float32)
    c1 = jax.random.normal(k1, (2, 3, 16, 16), dtype=jnp.float32)
    c2 = jax.random.normal(k2, (2, 5, 16, 16), dtype=jnp.float32)
    c3 = jax.random.normal(k3, (2, 4, 16, 16), dtype=jnp.float32)

    out = jax.block_until_ready(concat4(c0, c1, c2, c3))

    ref = jnp.concatenate([c0, c1, c2, c3], axis=1)
    assert out.shape == ref.shape, (out.shape, ref.shape)
    np.testing.assert_allclose(np.asarray(out), np.asarray(ref), rtol=0, atol=0)

    print("KERNEL_OK")
</pallas_src>

<mosaic_0001>
module attributes {stable_mosaic.version = 11 : i64} {
  func.func @kernel(%arg0: memref<2x1024xf32, #tpu.memory_space<any>>, %arg1: memref<2x768xf32, #tpu.memory_space<any>>, %arg2: memref<2x1280xf32, #tpu.memory_space<any>>, %arg3: memref<2x1024xf32, #tpu.memory_space<any>>, %arg4: memref<2x4096xf32, #tpu.memory_space<any>>, %arg5: memref<4x!tpu.dma_semaphore, #tpu.memory_space<semaphore_mem>>) attributes {dimension_semantics = [], scalar_prefetch = 0 : i64, scratch_operands = 1 : i64, tpu.core_type = #tpu.core_type<tc>} {
    %c0_i32 = arith.constant 0 : i32
    %c0_i32_0 = arith.constant 0 : i32
    %c0_i32_1 = arith.constant 0 : i32
    %0 = tpu.memref_slice %arg4[%c0_i32_0, %c0_i32_1] : memref<2x4096xf32, #tpu.memory_space<any>> -> memref<2x1024xf32, #tpu.memory_space<any>>
    %1 = tpu.memref_slice %arg5[%c0_i32] : memref<4x!tpu.dma_semaphore, #tpu.memory_space<semaphore_mem>> -> memref<1x!tpu.dma_semaphore, #tpu.memory_space<semaphore_mem>>
    %2 = tpu.memref_squeeze %1 : memref<1x!tpu.dma_semaphore, #tpu.memory_space<semaphore_mem>> -> memref<!tpu.dma_semaphore, #tpu.memory_space<semaphore_mem>>
    tpu.enqueue_dma source(%arg0 : memref<2x1024xf32, #tpu.memory_space<any>>) target(%0 : memref<2x1024xf32, #tpu.memory_space<any>>) target_semaphore(%2 : memref<!tpu.dma_semaphore, #tpu.memory_space<semaphore_mem>>)
    %c1_i32 = arith.constant 1 : i32
    %c0_i32_2 = arith.constant 0 : i32
    %c1024_i32 = arith.constant 1024 : i32
    %3 = tpu.memref_slice %arg4[%c0_i32_2, %c1024_i32] : memref<2x4096xf32, #tpu.memory_space<any>> -> memref<2x768xf32, #tpu.memory_space<any>>
    %4 = tpu.memref_slice %arg5[%c1_i32] : memref<4x!tpu.dma_semaphore, #tpu.memory_space<semaphore_mem>> -> memref<1x!tpu.dma_semaphore, #tpu.memory_space<semaphore_mem>>
    %5 = tpu.memref_squeeze %4 : memref<1x!tpu.dma_semaphore, #tpu.memory_space<semaphore_mem>> -> memref<!tpu.dma_semaphore, #tpu.memory_space<semaphore_mem>>
    tpu.enqueue_dma source(%arg1 : memref<2x768xf32, #tpu.memory_space<any>>) target(%3 : memref<2x768xf32, #tpu.memory_space<any>>) target_semaphore(%5 : memref<!tpu.dma_semaphore, #tpu.memory_space<semaphore_mem>>)
    %c2_i32 = arith.constant 2 : i32
    %c0_i32_3 = arith.constant 0 : i32
    %c1792_i32 = arith.constant 1792 : i32
    %6 = tpu.memref_slice %arg4[%c0_i32_3, %c1792_i32] : memref<2x4096xf32, #tpu.memory_space<any>> -> memref<2x1280xf32, #tpu.memory_space<any>>
    %7 = tpu.memref_slice %arg5[%c2_i32] : memref<4x!tpu.dma_semaphore, #tpu.memory_space<semaphore_mem>> -> memref<1x!tpu.dma_semaphore, #tpu.memory_space<semaphore_mem>>
    %8 = tpu.memref_squeeze %7 : memref<1x!tpu.dma_semaphore, #tpu.memory_space<semaphore_mem>> -> memref<!tpu.dma_semaphore, #tpu.memory_space<semaphore_mem>>
    tpu.enqueue_dma source(%arg2 : memref<2x1280xf32, #tpu.memory_space<any>>) target(%6 : memref<2x1280xf32, #tpu.memory_space<any>>) target_semaphore(%8 : memref<!tpu.dma_semaphore, #tpu.memory_space<semaphore_mem>>)
    %c3_i32 = arith.constant 3 : i32
    %c0_i32_4 = arith.constant 0 : i32
    %c3072_i32 = arith.constant 3072 : i32
    %9 = tpu.memref_slice %arg4[%c0_i32_4, %c3072_i32] : memref<2x4096xf32, #tpu.memory_space<any>> -> memref<2x1024xf32, #tpu.memory_space<any>>
    %10 = tpu.memref_slice %arg5[%c3_i32] : memref<4x!tpu.dma_semaphore, #tpu.memory_space<semaphore_mem>> -> memref<1x!tpu.dma_semaphore, #tpu.memory_space<semaphore_mem>>
    %11 = tpu.memref_squeeze %10 : memref<1x!tpu.dma_semaphore, #tpu.memory_space<semaphore_mem>> -> memref<!tpu.dma_semaphore, #tpu.memory_space<semaphore_mem>>
    tpu.enqueue_dma source(%arg3 : memref<2x1024xf32, #tpu.memory_space<any>>) target(%9 : memref<2x1024xf32, #tpu.memory_space<any>>) target_semaphore(%11 : memref<!tpu.dma_semaphore, #tpu.memory_space<semaphore_mem>>)
    %c0_i32_5 = arith.constant 0 : i32
    %c0_i32_6 = arith.constant 0 : i32
    %c0_i32_7 = arith.constant 0 : i32
    %12 = tpu.memref_slice %arg4[%c0_i32_6, %c0_i32_7] : memref<2x4096xf32, #tpu.memory_space<any>> -> memref<2x1024xf32, #tpu.memory_space<any>>
    %13 = tpu.memref_slice %arg5[%c0_i32_5] : memref<4x!tpu.dma_semaphore, #tpu.memory_space<semaphore_mem>> -> memref<1x!tpu.dma_semaphore, #tpu.memory_space<semaphore_mem>>
    %14 = tpu.memref_squeeze %13 : memref<1x!tpu.dma_semaphore, #tpu.memory_space<semaphore_mem>> -> memref<!tpu.dma_semaphore, #tpu.memory_space<semaphore_mem>>
    tpu.wait_dma2 semaphore(%14 : memref<!tpu.dma_semaphore, #tpu.memory_space<semaphore_mem>>) src(%arg0 : memref<2x1024xf32, #tpu.memory_space<any>>) dst(%12 : memref<2x1024xf32, #tpu.memory_space<any>>)
    %c1_i32_8 = arith.constant 1 : i32
    %c0_i32_9 = arith.constant 0 : i32
    %c1024_i32_10 = arith.constant 1024 : i32
    %15 = tpu.memref_slice %arg4[%c0_i32_9, %c1024_i32_10] : memref<2x4096xf32, #tpu.memory_space<any>> -> memref<2x768xf32, #tpu.memory_space<any>>
    %16 = tpu.memref_slice %arg5[%c1_i32_8] : memref<4x!tpu.dma_semaphore, #tpu.memory_space<semaphore_mem>> -> memref<1x!tpu.dma_semaphore, #tpu.memory_space<semaphore_mem>>
    %17 = tpu.memref_squeeze %16 : memref<1x!tpu.dma_semaphore, #tpu.memory_space<semaphore_mem>> -> memref<!tpu.dma_semaphore, #tpu.memory_space<semaphore_mem>>
    tpu.wait_dma2 semaphore(%17 : memref<!tpu.dma_semaphore, #tpu.memory_space<semaphore_mem>>) src(%arg1 : memref<2x768xf32, #tpu.memory_space<any>>) dst(%15 : memref<2x768xf32, #tpu.memory_space<any>>)
    %c2_i32_11 = arith.constant 2 : i32
    %c0_i32_12 = arith.constant 0 : i32
    %c1792_i32_13 = arith.constant 1792 : i32
    %18 = tpu.memref_slice %arg4[%c0_i32_12, %c1792_i32_13] : memref<2x4096xf32, #tpu.memory_space<any>> -> memref<2x1280xf32, #tpu.memory_space<any>>
    %19 = tpu.memref_slice %arg5[%c2_i32_11] : memref<4x!tpu.dma_semaphore, #tpu.memory_space<semaphore_mem>> -> memref<1x!tpu.dma_semaphore, #tpu.memory_space<semaphore_mem>>
    %20 = tpu.memref_squeeze %19 : memref<1x!tpu.dma_semaphore, #tpu.memory_space<semaphore_mem>> -> memref<!tpu.dma_semaphore, #tpu.memory_space<semaphore_mem>>
    tpu.wait_dma2 semaphore(%20 : memref<!tpu.dma_semaphore, #tpu.memory_space<semaphore_mem>>) src(%arg2 : memref<2x1280xf32, #tpu.memory_space<any>>) dst(%18 : memref<2x1280xf32, #tpu.memory_space<any>>)
    %c3_i32_14 = arith.constant 3 : i32
    %c0_i32_15 = arith.constant 0 : i32
    %c3072_i32_16 = arith.constant 3072 : i32
    %21 = tpu.memref_slice %arg4[%c0_i32_15, %c3072_i32_16] : memref<2x4096xf32, #tpu.memory_space<any>> -> memref<2x1024xf32, #tpu.memory_space<any>>
    %22 = tpu.memref_slice %arg5[%c3_i32_14] : memref<4x!tpu.dma_semaphore, #tpu.memory_space<semaphore_mem>> -> memref<1x!tpu.dma_semaphore, #tpu.memory_space<semaphore_mem>>
    %23 = tpu.memref_squeeze %22 : memref<1x!tpu.dma_semaphore, #tpu.memory_space<semaphore_mem>> -> memref<!tpu.dma_semaphore, #tpu.memory_space<semaphore_mem>>
    tpu.wait_dma2 semaphore(%23 : memref<!tpu.dma_semaphore, #tpu.memory_space<semaphore_mem>>) src(%arg3 : memref<2x1024xf32, #tpu.memory_space<any>>) dst(%21 : memref<2x1024xf32, #tpu.memory_space<any>>)
    return
  }
}

</mosaic_0001>

<llo_original>
// kernel: tpu_custom_call.1
$region0: #{tpu_custom_call.1}
  #allocation0 [shape = 'u32[]', space=smem, size = 0x4, offset = 0x4, fixed_abs, tag = 'smem constant byte address 0x4 - core index']
  #allocation1 [shape = 'u32[72,128]{1,0:T(1,128)}', space=vmem, size = 0x9000, scoped, tag = 'internal scratch']
  #allocation2 [shape = 's32[4]{0}', space=sflag, size = 0x10, scoped, tag = 'scratch operand']
  #allocation3 [shape = 's32[]', space=sflag, size = 0x4, offset = 0, fixed_abs, tag = 'sflag constant byte address 0x0 - dummy sync flag']
  #allocation4 [shape = 'u32[0]{0}', space=smem, size = 0, offset = 0, fixed_abs, tag = 'smem constant byte address 0x0 - null']
  #allocation5 [shape = 's32[]', space=sflag, size = 0x4, offset = 0, fixed_abs, tag = 'sflag constant byte address 0x0 - dummy sync flag']
  #allocation6 [shape = 'u32[0]{0}', space=smem, size = 0, offset = 0, fixed_abs, tag = 'smem constant byte address 0x0 - null']
  #allocation7 [shape = 's32[]', space=sflag, size = 0x4, offset = 0, fixed_abs, tag = 'sflag constant byte address 0x0 - dummy sync flag']
  #allocation8 [shape = 'u32[0]{0}', space=smem, size = 0, offset = 0, fixed_abs, tag = 'smem constant byte address 0x0 - null']
  #allocation9 [shape = 's32[]', space=sflag, size = 0x4, offset = 0, fixed_abs, tag = 'sflag constant byte address 0x0 - dummy sync flag']
  #allocation10 [shape = 'u32[0]{0}', space=smem, size = 0, offset = 0, fixed_abs, tag = 'smem constant byte address 0x0 - null']
  %s0 = inlined_call_operand.hbm [shape: f32[2,1024], index: 0, kind: input, shape index: {}]
  %s1 = inlined_call_operand.hbm [shape: f32[2,768], index: 1, kind: input, shape index: {}]
  %s2 = inlined_call_operand.hbm [shape: f32[2,1280], index: 2, kind: input, shape index: {}]
  %s3 = inlined_call_operand.hbm [shape: f32[2,1024], index: 3, kind: input, shape index: {}]
  %s4 = inlined_call_operand.hbm [shape: f32[2,4096], index: 4, kind: output, shape index: {}]
  %s5 = sld [smem:[#allocation0]]
  $region2: #{tpu_custom_call.1} parent=0
    _
  %s7 = ssub.s32 1, %s5
  %s8 = scalar_select 0, %s7, %s5
  %s10 = sshll.u32 1, 14
  %s11 = sxor.u32 4294967295, %s10
  %s13 = sshll.u32 %s0, 4
  %s14 = int_to_ptr.hbm [resolvable:$true] %s13
  %s15 = sshll.u32 %s4, 4
  %s16 = int_to_ptr.hbm [resolvable:$true] %s15
  %19 = dma.general %s14, 256, %s16, [#allocation2], [#allocation3], [#allocation4], 0, 0
  %s20 = scalar_lea.hbm %s4, 16
  %s21 = scalar_lea.sflag [#allocation2], 1
  %s23 = sshll.u32 1, 14
  %s24 = sxor.u32 4294967295, %s23
  %s26 = sshll.u32 %s1, 4
  %s27 = int_to_ptr.hbm [resolvable:$true] %s26
  %s28 = sshll.u32 %s20, 4
  %s29 = int_to_ptr.hbm [resolvable:$true] %s28
  %32 = dma.general %s27, 192, %s29, %s21, [#allocation5], [#allocation6], 0, 0
  %s33 = scalar_lea.hbm %s4, 28
  %s34 = scalar_lea.sflag [#allocation2], 2
  %s36 = sshll.u32 1, 14
  %s37 = sxor.u32 4294967295, %s36
  %s39 = sshll.u32 %s2, 4
  %s40 = int_to_ptr.hbm [resolvable:$true] %s39
  %s41 = sshll.u32 %s33, 4
  %s42 = int_to_ptr.hbm [resolvable:$true] %s41
  %45 = dma.general %s40, 320, %s42, %s34, [#allocation7], [#allocation8], 0, 0
  %s46 = scalar_lea.hbm %s4, 48
  %s47 = scalar_lea.sflag [#allocation2], 3
  %s49 = sshll.u32 1, 14
  %s50 = sxor.u32 4294967295, %s49
  %s52 = sshll.u32 %s3, 4
  %s53 = int_to_ptr.hbm [resolvable:$true] %s52
  %s54 = sshll.u32 %s46, 4
  %s55 = int_to_ptr.hbm [resolvable:$true] %s54
  %58 = dma.general %s53, 256, %s55, %s47, [#allocation9], [#allocation10], 0, 0
  %s59 = smul.u32 2, 1
  %s60 = smul.u32 %s59, 8
  %s61 = sshll.u32 %s60, 4
  %62 = dma.done [#allocation2], %s61
  %s63 = smul.u32 %s59, 6
  %s64 = sshll.u32 %s63, 4
  %65 = dma.done %s21, %s64
  %s66 = smul.u32 %s59, 10
  %s67 = sshll.u32 %s66, 4
  %68 = dma.done %s34, %s67
  %s69 = sshll.u32 %s60, 4
  %70 = dma.done %s47, %s69
  %71 = vsyncmov [#allocation2]
  %s72 = vpop.sfrf %71
  %p73 = scmp.eq.s32.totalorder %s72, 0
  %p74 = pneg %p73
  %76 = shalt.err (%p74)
  %s77 = scalar_lea.sflag [#allocation2], 1
  %78 = vsyncmov %s77
  %s79 = vpop.sfrf %78
  %p80 = scmp.eq.s32.totalorder %s79, 0
  %p81 = pneg %p80
  %83 = shalt.err (%p81)
  %s84 = scalar_lea.sflag [#allocation2], 2
  %85 = vsyncmov %s84
  %s86 = vpop.sfrf %85
  %p87 = scmp.eq.s32.totalorder %s86, 0
  %p88 = pneg %p87
  %90 = shalt.err (%p88)
  %s91 = scalar_lea.sflag [#allocation2], 3
  %92 = vsyncmov %s91
  %s93 = vpop.sfrf %92
  %p94 = scmp.eq.s32.totalorder %s93, 0
  %p95 = pneg %p94
  %97 = shalt.err (%p95)

</llo_original>
